<compile_context>
chip_gen: v5e
topology: v5e:2x2
jax: 0.10.0
libtpu: 0.0.40
codegen_flags: <defaults>
</compile_context>

<pallas_src>
import functools

import jax
import jax.numpy as jnp
from jax import lax
from jax.experimental import pallas as pl
from jax.experimental.pallas import tpu as pltpu


# Packed gate order: [i, f, o, g] -> sigmoid on the first 3, tanh on the last.
_GATES = (
    ("W_ii", "W_hi", "b_i"),   # input gate   (sigmoid)
    ("W_if", "W_hf", "b_f"),   # forget gate  (sigmoid)
    ("W_io", "W_ho", "b_o"),   # output gate  (sigmoid)
    ("W_ig", "W_hg", "b_g"),   # cell gate    (tanh)
)


def _round_up(n, m):
    return ((n + m - 1) // m) * m


def _lstm_kernel(gx_ref, wh_ref, h_ref, c_ref, *, total_t, tc, hp):
    """One grid step = `tc` timesteps of the recurrence.

    gx_ref : (tc, Bp, 4*Hp)  precomputed x @ W_x + b (bias folded in)
    wh_ref : (Hp, 4*Hp)      fused recurrent weights (resident in VMEM)
    h_ref/c_ref : (Bp, Hp) f32 outputs, reused as the carry across the
                  sequential time grid axis (constant index map -> resident).
    """
    s = pl.program_id(0)

    @pl.when(s == 0)
    def _():
        h_ref[...] = jnp.zeros_like(h_ref)
        c_ref[...] = jnp.zeros_like(c_ref)

    w_h = wh_ref[...]                      # load once per grid step
    needs_mask = (total_t % tc) != 0       # static python bool

    def step(k, carry):
        h, c = carry                                           # f32 (Bp, Hp)
        # Single fused MXU push for all four gates: (Bp,Hp) x (Hp,4Hp).
        pre = (gx_ref[k].astype(jnp.float32)
               + jnp.dot(h.astype(w_h.dtype), w_h,
                         preferred_element_type=jnp.float32))  # (Bp, 4Hp)
        # One wide sigmoid over [i, f, o], one tanh over g.
        sig = jax.nn.sigmoid(pre[:, :3 * hp])
        i_t = sig[:, 0 * hp:1 * hp]
        f_t = sig[:, 1 * hp:2 * hp]
        o_t = sig[:, 2 * hp:3 * hp]
        g_t = jnp.tanh(pre[:, 3 * hp:])
        c_new = f_t * c + i_t * g_t
        h_new = o_t * jnp.tanh(c_new)
        if needs_mask:
            valid = (s * tc + k) < total_t
            h_new = jnp.where(valid, h_new, h)
            c_new = jnp.where(valid, c_new, c)
        return h_new, c_new

    h, c = lax.fori_loop(0, tc, step, (h_ref[...], c_ref[...]), unroll=True)
    h_ref[...] = h
    c_ref[...] = c


def _pack_padded(params, input_size, hidden_size, hp, compute_dtype):
    """Pack per-gate params into fused, tile-padded matrices.

    Zero padding is exact: padded gate pre-activations are 0 -> i=f=o=0.5,
    g=0 -> padded h/c columns stay identically zero and contribute nothing
    through the zero-padded W_h rows.
    """
    wx = jnp.zeros((input_size, 4 * hp), jnp.float32)
    wh = jnp.zeros((hp, 4 * hp), jnp.float32)
    b = jnp.zeros((1, 4 * hp), jnp.float32)
    for g, (kx, kh, kb) in enumerate(_GATES):
        wx = wx.at[:, g * hp:g * hp + hidden_size].set(params[kx])
        wh = wh.at[:hidden_size, g * hp:g * hp + hidden_size].set(params[kh])
        b = b.at[0, g * hp:g * hp + hidden_size].set(params[kb])
    return wx.astype(compute_dtype), wh.astype(compute_dtype), b


@functools.partial(jax.jit, static_argnames=("time_chunk", "compute_dtype"))
def lstm_forward(x, params, *, time_chunk=8, compute_dtype=jnp.float32):
    """x: (B, T, F) float32. Returns (h_T, c_T), each (B, H) float32."""
    B, T, F = x.shape
    H = params["W_hi"].shape[0]

    if T == 0:  # guard: empty sequence -> initial (zero) state
        z = jnp.zeros((B, H), jnp.float32)
        return z, z

    Hp = _round_up(H, 128)           # lane-aligned hidden size
    Bp = _round_up(B, 8)             # sublane-aligned batch
    Tc = max(1, min(time_chunk, T))  # timesteps per grid step
    Sc = pl.cdiv(T, Tc)              # grid steps
    Tp = Sc * Tc                     # padded time extent

    wx, wh, b = _pack_padded(params, F, H, Hp, compute_dtype)

    # Hoisted, fully-parallel input projection (+ bias), emitted time-major so
    # the sequential kernel streams contiguous (Tc, Bp, 4Hp) chunks.
    gx = jnp.einsum("btf,fg->tbg", x.astype(compute_dtype), wx,
                    preferred_element_type=jnp.float32) + b          # (T,B,4Hp)
    gx = gx.astype(compute_dtype)
    gx = jnp.pad(gx, ((0, Tp - T), (0, Bp - B), (0, 0)))             # (Tp,Bp,4Hp)

    kernel = functools.partial(_lstm_kernel, total_t=T, tc=Tc, hp=Hp)

    grid_spec = pltpu.PrefetchScalarGridSpec(
        num_scalar_prefetch=0,
        grid=(Sc,),
        in_specs=[
            # Pre-computed gate inputs: one (Tc, Bp, 4Hp) chunk per grid step.
            pl.BlockSpec((Tc, Bp, 4 * Hp), lambda s: (s, 0, 0)),
            # Fused recurrent weights: resident (constant index map).
            pl.BlockSpec((Hp, 4 * Hp), lambda s: (0, 0)),
        ],
        out_specs=[
            pl.BlockSpec((Bp, Hp), lambda s: (0, 0)),
            pl.BlockSpec((Bp, Hp), lambda s: (0, 0)),
        ],
    )

    h_p, c_p = pl.pallas_call(
        kernel,
        out_shape=(jax.ShapeDtypeStruct((Bp, Hp), jnp.float32),
                   jax.ShapeDtypeStruct((Bp, Hp), jnp.float32)),
        grid_spec=grid_spec,
        compiler_params=pltpu.CompilerParams(
            dimension_semantics=("arbitrary",)),  # sequential time recurrence
    )(gx, wh)

    return h_p[:B, :H], c_p[:B, :H]


def xavier_uniform(key, shape, dtype=jnp.float32):
    fan_in, fan_out = shape
    limit = jnp.sqrt(6.0 / (fan_in + fan_out)).astype(dtype)
    return jax.random.uniform(key, shape, dtype, minval=-limit, maxval=limit)


def init_params(key, input_size, hidden_size):
    """Per-gate parameters mirroring the PyTorch module (xavier weights, zero biases)."""
    names_x = ["W_ii", "W_if", "W_ig", "W_io"]
    names_h = ["W_hi", "W_hf", "W_hg", "W_ho"]
    names_b = ["b_i", "b_f", "b_g", "b_o"]
    keys = jax.random.split(key, 8)
    p = {}
    for i, n in enumerate(names_x):
        p[n] = xavier_uniform(keys[i], (input_size, hidden_size))
    for i, n in enumerate(names_h):
        p[n] = xavier_uniform(keys[4 + i], (hidden_size, hidden_size))
    for n in names_b:
        p[n] = jnp.zeros((hidden_size,), jnp.float32)
    return p


def lstm_reference(x, params):
    """Pure-JAX reference mirroring the PyTorch forward exactly."""
    B, T, _ = x.shape
    H = params["W_hi"].shape[0]
    h = jnp.zeros((B, H), jnp.float32)
    c = jnp.zeros((B, H), jnp.float32)
    for t in range(T):
        xt = x[:, t, :]
        i_t = jax.nn.sigmoid(xt @ params["W_ii"] + h @ params["W_hi"] + params["b_i"])
        f_t = jax.nn.sigmoid(xt @ params["W_if"] + h @ params["W_hf"] + params["b_f"])
        g_t = jnp.tanh(xt @ params["W_ig"] + h @ params["W_hg"] + params["b_g"])
        c = f_t * c + i_t * g_t
        o_t = jax.nn.sigmoid(xt @ params["W_io"] + h @ params["W_ho"] + params["b_o"])
        h = o_t * jnp.tanh(c)
    return h, c


if __name__ == "__main__":
    B, T, F, H = 2, 8, 16, 32
    key = jax.random.PRNGKey(0)
    k_x, k_p = jax.random.split(key)
    x = jax.random.normal(k_x, (B, T, F), jnp.float32)
    params = init_params(k_p, F, H)

    h_ref, c_ref = lstm_reference(x, params)

    # f32 path, 2 grid steps of 4 timesteps each (exercises the resident carry).
    h_t, c_t = lstm_forward(x, params, time_chunk=4)
    h_t, c_t = jax.block_until_ready((h_t, c_t))
    assert jnp.allclose(h_t, h_ref, atol=1e-5, rtol=1e-5)
    assert jnp.allclose(c_t, c_ref, atol=1e-5, rtol=1e-5)

    # Ragged T (T % time_chunk != 0) exercises the remainder-masking path.
    x2 = x[:, :6, :]
    h2_ref, c2_ref = lstm_reference(x2, params)
    h2, c2 = lstm_forward(x2, params, time_chunk=4)
    h2, c2 = jax.block_until_ready((h2, c2))
    assert jnp.allclose(h2, h2_ref, atol=1e-5, rtol=1e-5)
    assert jnp.allclose(c2, c2_ref, atol=1e-5, rtol=1e-5)

    print("KERNEL_OK")
</pallas_src>

<mosaic_0001>
module attributes {stable_mosaic.version = 11 : i64} {
  func.func @_lstm_kernel(%arg0: i32, %arg1: memref<4x8x512xf32, #tpu.memory_space<vmem>>, %arg2: memref<128x512xf32, #tpu.memory_space<vmem>>, %arg3: memref<8x128xf32, #tpu.memory_space<vmem>>, %arg4: memref<8x128xf32, #tpu.memory_space<vmem>>) attributes {dimension_semantics = [#tpu.dimension_semantics<arbitrary>], iteration_bounds = array<i64: 2>, scalar_prefetch = 0 : i64, scratch_operands = 0 : i64, tpu.core_type = #tpu.core_type<tc>, window_params = [{transform_indices = @transform_0, window_bounds = array<i64: 4, 8, 512>}, {pipeline_mode = #tpu.pipeline_mode<synchronous>, transform_indices = @transform_1, window_bounds = array<i64: 128, 512>}, {pipeline_mode = #tpu.pipeline_mode<synchronous>, transform_indices = @transform_2, window_bounds = array<i64: 8, 128>}, {pipeline_mode = #tpu.pipeline_mode<synchronous>, transform_indices = @transform_3, window_bounds = array<i64: 8, 128>}]} {
    %c0_i32 = arith.constant 0 : i32
    %0 = arith.cmpi eq, %arg0, %c0_i32 : i32
    %1 = arith.extui %0 : i1 to i32
    %c0_i32_0 = arith.constant 0 : i32
    %2 = arith.cmpi ne, %1, %c0_i32_0 : i32
    scf.if %2 {
      %cst_26 = arith.constant 0.000000e+00 : f32
      %92 = vector.broadcast %cst_26 : f32 to vector<8x128xf32>
      %c0_27 = arith.constant 0 : index
      %c0_28 = arith.constant 0 : index
      %93 = vector.load %arg3[%c0_27, %c0_28] : memref<8x128xf32, #tpu.memory_space<vmem>>, vector<8x128xf32>
      tpu.vector_store %arg3[%c0_27, %c0_28], %92 {strides = array<i32>} : memref<8x128xf32, #tpu.memory_space<vmem>>, vector<8x128xf32>,
      %cst_29 = arith.constant 0.000000e+00 : f32
      %94 = vector.broadcast %cst_29 : f32 to vector<8x128xf32>
      %c0_30 = arith.constant 0 : index
      %c0_31 = arith.constant 0 : index
      %95 = vector.load %arg4[%c0_30, %c0_31] : memref<8x128xf32, #tpu.memory_space<vmem>>, vector<8x128xf32>
      tpu.vector_store %arg4[%c0_30, %c0_31], %94 {strides = array<i32>} : memref<8x128xf32, #tpu.memory_space<vmem>>, vector<8x128xf32>,
    } else {
    }
    %c0 = arith.constant 0 : index
    %c0_1 = arith.constant 0 : index
    %3 = vector.load %arg2[%c0, %c0_1] : memref<128x512xf32, #tpu.memory_space<vmem>>, vector<128x512xf32>
    %c0_2 = arith.constant 0 : index
    %c0_3 = arith.constant 0 : index
    %4 = vector.load %arg3[%c0_2, %c0_3] : memref<8x128xf32, #tpu.memory_space<vmem>>, vector<8x128xf32>
    %c0_4 = arith.constant 0 : index
    %c0_5 = arith.constant 0 : index
    %5 = vector.load %arg4[%c0_4, %c0_5] : memref<8x128xf32, #tpu.memory_space<vmem>>, vector<8x128xf32>
    %c0_i32_6 = arith.constant 0 : i32
    %6 = arith.index_cast %c0_i32_6 : i32 to index
    %c0_7 = arith.constant 0 : index
    %c0_8 = arith.constant 0 : index
    %7 = vector.load %arg1[%6, %c0_7, %c0_8] : memref<4x8x512xf32, #tpu.memory_space<vmem>>, vector<1x8x512xf32>
    %8 = vector.shape_cast %7 : vector<1x8x512xf32> to vector<8x512xf32>
    %cst = arith.constant dense<0.000000e+00> : vector<8x512xf32>
    %9 = tpu.matmul %4, %3, %cst {dimension_numbers = #tpu.dot_dimension_numbers<[1], [0], [0], [1], [0, 0, 1, 1], [], []>} : vector<8x128xf32>, vector<128x512xf32>, vector<8x512xf32> -> vector<8x512xf32>
    %10 = arith.addf %8, %9 : vector<8x512xf32>
    %11 = vector.extract_strided_slice %10 {offsets = [0, 0], sizes = [8, 384], strides = [1, 1]} : vector<8x512xf32> to vector<8x384xf32>
    %12 = arith.negf %11 : vector<8x384xf32>
    %13 = math.exp %12 : vector<8x384xf32>
    %cst_9 = arith.constant 1.000000e+00 : f32
    %14 = vector.broadcast %cst_9 : f32 to vector<8x384xf32>
    %15 = arith.addf %14, %13 : vector<8x384xf32>
    %16 = arith.divf %14, %15 : vector<8x384xf32>
    %17 = vector.extract_strided_slice %16 {offsets = [0, 0], sizes = [8, 128], strides = [1, 1]} : vector<8x384xf32> to vector<8x128xf32>
    %18 = vector.extract_strided_slice %16 {offsets = [0, 128], sizes = [8, 128], strides = [1, 1]} : vector<8x384xf32> to vector<8x128xf32>
    %19 = vector.extract_strided_slice %16 {offsets = [0, 256], sizes = [8, 128], strides = [1, 1]} : vector<8x384xf32> to vector<8x128xf32>
    %20 = vector.extract_strided_slice %10 {offsets = [0, 384], sizes = [8, 128], strides = [1, 1]} : vector<8x512xf32> to vector<8x128xf32>
    %21 = math.tanh %20 : vector<8x128xf32>
    %22 = arith.mulf %18, %5 : vector<8x128xf32>
    %23 = arith.mulf %17, %21 : vector<8x128xf32>
    %24 = arith.addf %22, %23 : vector<8x128xf32>
    %25 = math.tanh %24 : vector<8x128xf32>
    %26 = arith.mulf %19, %25 : vector<8x128xf32>
    %c1_i32 = arith.constant 1 : i32
    %27 = arith.index_cast %c1_i32 : i32 to index
    %c0_10 = arith.constant 0 : index
    %c0_11 = arith.constant 0 : index
    %28 = vector.load %arg1[%27, %c0_10, %c0_11] : memref<4x8x512xf32, #tpu.memory_space<vmem>>, vector<1x8x512xf32>
    %29 = vector.shape_cast %28 : vector<1x8x512xf32> to vector<8x512xf32>
    %cst_12 = arith.constant dense<0.000000e+00> : vector<8x512xf32>
    %30 = tpu.matmul %26, %3, %cst_12 {dimension_numbers = #tpu.dot_dimension_numbers<[1], [0], [0], [1], [0, 0, 1, 1], [], []>} : vector<8x128xf32>, vector<128x512xf32>, vector<8x512xf32> -> vector<8x512xf32>
    %31 = arith.addf %29, %30 : vector<8x512xf32>
    %32 = vector.extract_strided_slice %31 {offsets = [0, 0], sizes = [8, 384], strides = [1, 1]} : vector<8x512xf32> to vector<8x384xf32>
    %33 = arith.negf %32 : vector<8x384xf32>
    %34 = math.exp %33 : vector<8x384xf32>
    %cst_13 = arith.constant 1.000000e+00 : f32
    %35 = vector.broadcast %cst_13 : f32 to vector<8x384xf32>
    %36 = arith.addf %35, %34 : vector<8x384xf32>
    %37 = arith.divf %35, %36 : vector<8x384xf32>
    %38 = vector.extract_strided_slice %37 {offsets = [0, 0], sizes = [8, 128], strides = [1, 1]} : vector<8x384xf32> to vector<8x128xf32>
    %39 = vector.extract_strided_slice %37 {offsets = [0, 128], sizes = [8, 128], strides = [1, 1]} : vector<8x384xf32> to vector<8x128xf32>
    %40 = vector.extract_strided_slice %37 {offsets = [0, 256], sizes = [8, 128], strides = [1, 1]} : vector<8x384xf32> to vector<8x128xf32>
    %41 = vector.extract_strided_slice %31 {offsets = [0, 384], sizes = [8, 128], strides = [1, 1]} : vector<8x512xf32> to vector<8x128xf32>
    %42 = math.tanh %41 : vector<8x128xf32>
    %43 = arith.mulf %39, %24 : vector<8x128xf32>
    %44 = arith.mulf %38, %42 : vector<8x128xf32>
    %45 = arith.addf %43, %44 : vector<8x128xf32>
    %46 = math.tanh %45 : vector<8x128xf32>
    %47 = arith.mulf %40, %46 : vector<8x128xf32>
    %c2_i32 = arith.constant 2 : i32
    %48 = arith.index_cast %c2_i32 : i32 to index
    %c0_14 = arith.constant 0 : index
    %c0_15 = arith.constant 0 : index
    %49 = vector.load %arg1[%48, %c0_14, %c0_15] : memref<4x8x512xf32, #tpu.memory_space<vmem>>, vector<1x8x512xf32>
    %50 = vector.shape_cast %49 : vector<1x8x512xf32> to vector<8x512xf32>
    %cst_16 = arith.constant dense<0.000000e+00> : vector<8x512xf32>
    %51 = tpu.matmul %47, %3, %cst_16 {dimension_numbers = #tpu.dot_dimension_numbers<[1], [0], [0], [1], [0, 0, 1, 1], [], []>} : vector<8x128xf32>, vector<128x512xf32>, vector<8x512xf32> -> vector<8x512xf32>
    %52 = arith.addf %50, %51 : vector<8x512xf32>
    %53 = vector.extract_strided_slice %52 {offsets = [0, 0], sizes = [8, 384], strides = [1, 1]} : vector<8x512xf32> to vector<8x384xf32>
    %54 = arith.negf %53 : vector<8x384xf32>
    %55 = math.exp %54 : vector<8x384xf32>
    %cst_17 = arith.constant 1.000000e+00 : f32
    %56 = vector.broadcast %cst_17 : f32 to vector<8x384xf32>
    %57 = arith.addf %56, %55 : vector<8x384xf32>
    %58 = arith.divf %56, %57 : vector<8x384xf32>
    %59 = vector.extract_strided_slice %58 {offsets = [0, 0], sizes = [8, 128], strides = [1, 1]} : vector<8x384xf32> to vector<8x128xf32>
    %60 = vector.extract_strided_slice %58 {offsets = [0, 128], sizes = [8, 128], strides = [1, 1]} : vector<8x384xf32> to vector<8x128xf32>
    %61 = vector.extract_strided_slice %58 {offsets = [0, 256], sizes = [8, 128], strides = [1, 1]} : vector<8x384xf32> to vector<8x128xf32>
    %62 = vector.extract_strided_slice %52 {offsets = [0, 384], sizes = [8, 128], strides = [1, 1]} : vector<8x512xf32> to vector<8x128xf32>
    %63 = math.tanh %62 : vector<8x128xf32>
    %64 = arith.mulf %60, %45 : vector<8x128xf32>
    %65 = arith.mulf %59, %63 : vector<8x128xf32>
    %66 = arith.addf %64, %65 : vector<8x128xf32>
    %67 = math.tanh %66 : vector<8x128xf32>
    %68 = arith.mulf %61, %67 : vector<8x128xf32>
    %c3_i32 = arith.constant 3 : i32
    %69 = arith.index_cast %c3_i32 : i32 to index
    %c0_18 = arith.constant 0 : index
    %c0_19 = arith.constant 0 : index
    %70 = vector.load %arg1[%69, %c0_18, %c0_19] : memref<4x8x512xf32, #tpu.memory_space<vmem>>, vector<1x8x512xf32>
    %71 = vector.shape_cast %70 : vector<1x8x512xf32> to vector<8x512xf32>
    %cst_20 = arith.constant dense<0.000000e+00> : vector<8x512xf32>
    %72 = tpu.matmul %68, %3, %cst_20 {dimension_numbers = #tpu.dot_dimension_numbers<[1], [0], [0], [1], [0, 0, 1, 1], [], []>} : vector<8x128xf32>, vector<128x512xf32>, vector<8x512xf32> -> vector<8x512xf32>
    %73 = arith.addf %71, %72 : vector<8x512xf32>
    %74 = vector.extract_strided_slice %73 {offsets = [0, 0], sizes = [8, 384], strides = [1, 1]} : vector<8x512xf32> to vector<8x384xf32>
    %75 = arith.negf %74 : vector<8x384xf32>
    %76 = math.exp %75 : vector<8x384xf32>
    %cst_21 = arith.constant 1.000000e+00 : f32
    %77 = vector.broadcast %cst_21 : f32 to vector<8x384xf32>
    %78 = arith.addf %77, %76 : vector<8x384xf32>
    %79 = arith.divf %77, %78 : vector<8x384xf32>
    %80 = vector.extract_strided_slice %79 {offsets = [0, 0], sizes = [8, 128], strides = [1, 1]} : vector<8x384xf32> to vector<8x128xf32>
    %81 = vector.extract_strided_slice %79 {offsets = [0, 128], sizes = [8, 128], strides = [1, 1]} : vector<8x384xf32> to vector<8x128xf32>
    %82 = vector.extract_strided_slice %79 {offsets = [0, 256], sizes = [8, 128], strides = [1, 1]} : vector<8x384xf32> to vector<8x128xf32>
    %83 = vector.extract_strided_slice %73 {offsets = [0, 384], sizes = [8, 128], strides = [1, 1]} : vector<8x512xf32> to vector<8x128xf32>
    %84 = math.tanh %83 : vector<8x128xf32>
    %85 = arith.mulf %81, %66 : vector<8x128xf32>
    %86 = arith.mulf %80, %84 : vector<8x128xf32>
    %87 = arith.addf %85, %86 : vector<8x128xf32>
    %88 = math.tanh %87 : vector<8x128xf32>
    %89 = arith.mulf %82, %88 : vector<8x128xf32>
    %c4_i32 = arith.constant 4 : i32
    %c0_22 = arith.constant 0 : index
    %c0_23 = arith.constant 0 : index
    %90 = vector.load %arg3[%c0_22, %c0_23] : memref<8x128xf32, #tpu.memory_space<vmem>>, vector<8x128xf32>
    tpu.vector_store %arg3[%c0_22, %c0_23], %89 {strides = array<i32>} : memref<8x128xf32, #tpu.memory_space<vmem>>, vector<8x128xf32>,
    %c0_24 = arith.constant 0 : index
    %c0_25 = arith.constant 0 : index
    %91 = vector.load %arg4[%c0_24, %c0_25] : memref<8x128xf32, #tpu.memory_space<vmem>>, vector<8x128xf32>
    tpu.vector_store %arg4[%c0_24, %c0_25], %87 {strides = array<i32>} : memref<8x128xf32, #tpu.memory_space<vmem>>, vector<8x128xf32>,
    return
  }
  func.func @transform_0(%arg0: i32) -> (i32, i32, i32) {
    %c0_i32 = arith.constant 0 : i32
    %c0_i32_0 = arith.constant 0 : i32
    %c0_i32_1 = arith.constant 0 : i32
    return %arg0, %c0_i32, %c0_i32_0 : i32, i32, i32
  }
  func.func @transform_1(%arg0: i32) -> (i32, i32) {
    %c0_i32 = arith.constant 0 : i32
    %c0_i32_0 = arith.constant 0 : i32
    %c0_i32_1 = arith.constant 0 : i32
    return %c0_i32, %c0_i32_0 : i32, i32
  }
  func.func @transform_2(%arg0: i32) -> (i32, i32) {
    %c0_i32 = arith.constant 0 : i32
    %c0_i32_0 = arith.constant 0 : i32
    %c0_i32_1 = arith.constant 0 : i32
    return %c0_i32, %c0_i32_0 : i32, i32
  }
  func.func @transform_3(%arg0: i32) -> (i32, i32) {
    %c0_i32 = arith.constant 0 : i32
    %c0_i32_0 = arith.constant 0 : i32
    %c0_i32_1 = arith.constant 0 : i32
    return %c0_i32, %c0_i32_0 : i32, i32
  }
}

</mosaic_0001>

<llo_original>
// kernel: lstm_forward.1
$region0: #{lstm_forward.1}
  #allocation0 [shape = 'u32[]', space=smem, size = 0x4, offset = 0x4, fixed_abs, tag = 'smem constant byte address 0x4 - core index']
  #allocation1 [shape = 'u32[72,128]{1,0:T(1,128)}', space=vmem, size = 0x9000, scoped, tag = 'internal scratch']
  %s0 = inlined_call_operand.vmem [shape: f32[8,8,512], index: 0, kind: input, shape index: {}]
  %s1 = inlined_call_operand.vmem [shape: f32[128,512], index: 1, kind: input, shape index: {}]
  %s2 = inlined_call_operand.vmem [shape: f32[8,128], index: 2, kind: output, shape index: {0}]
  %s3 = inlined_call_operand.vmem [shape: f32[8,128], index: 3, kind: output, shape index: {1}]
  %4 = xla_tuple %s2, %s3
  %s5 = sld [smem:[#allocation0]]
  $region53: #{lstm_forward.1} parent=0
    _
  %s7 = ssub.s32 1, %s5
  %s8 = scalar_select 0, %s7, %s5
  loop: start=0, step=1, limit=4
  $region2: #{lstm_forward.1} parent=0 // loop_pre_header
    _
  $region3: #{lstm_forward.1} parent=0 // loop_header
    %s10 = sphi 0, %s14
    %p11 = scmp.ge.s32.totalorder %s10, 4
    %s20 = sphi 0, %s22
    %s23 = sphi 0, %s20
    %s24 = sphi 0, %s23
    %s40 = sphi 0, %s24
    %s44 = sphi 0, %s44
    %s46 = sphi 0, %s44
    %s47 = sphi 0, %s46
    %s61 = sphi 0, %s47
    %s65 = sphi 0, %s65
    %s67 = sphi 0, %s65
    %s68 = sphi 0, %s67
    %s82 = sphi 0, %s68
    %s86 = sphi 0, %s86
    %s88 = sphi 0, %s86
    %s89 = sphi 0, %s88
    %s103 = sphi 0, %s89
  $region4: #{lstm_forward.1} parent=0 // loop_header_branch
    %13 = sbr.rel (%p11) target = $region8
  $region5: #{lstm_forward.1} parent=0 // loop_body
    %s15 = ssub.s32 %s10, 1
    %s16 = ssub.s32 %s10, 2
    %s17 = sadd.s32 %s10, 1
    %s18 = ssub.s32 %s10, %s17
    %p19 = scmp.eq.s32.totalorder %s18, 0
    %s21 = sadd.s32 %s20, 1
    %s22 = scalar_select %p19, %s20, %s21
    %p25 = pneg %p19
    %p26 = scmp.eq.s32.totalorder %s10, 1
    %p27 = por %p25, %p26
    %p28 = scmp.ne.s32.totalorder %s20, %s23
    %p29 = scmp.eq.s32.totalorder %s10, 0
    %p30 = por %p28, %p29
    %p31 = scmp.ne.s32.totalorder %s20, %s23
    %p32 = scmp.eq.s32.totalorder %s15, 1
    %p33 = por %p31, %p32
    %p34 = scmp.ne.s32.totalorder %s23, %s24
    %p35 = scmp.eq.s32.totalorder %s15, 0
    %p36 = por %p34, %p35
    %p37 = scmp.ne.s32.totalorder %s23, %s24
    %p38 = scmp.eq.s32.totalorder %s16, 1
    %p39 = por %p37, %p38
    %p41 = scmp.ne.s32.totalorder %s24, %s40
    %p42 = scmp.eq.s32.totalorder %s16, 0
    %p43 = por %p41, %p42
    %s45 = sadd.s32 %s44, 1
    %p48 = scmp.eq.s32.totalorder %s10, 1
    %p49 = scmp.ne.s32.totalorder %s44, %s46
    %p50 = scmp.eq.s32.totalorder %s10, 0
    %p51 = por %p49, %p50
    %p52 = scmp.ne.s32.totalorder %s44, %s46
    %p53 = scmp.eq.s32.totalorder %s15, 1
    %p54 = por %p52, %p53
    %p55 = scmp.ne.s32.totalorder %s46, %s47
    %p56 = scmp.eq.s32.totalorder %s15, 0
    %p57 = por %p55, %p56
    %p58 = scmp.ne.s32.totalorder %s46, %s47
    %p59 = scmp.eq.s32.totalorder %s16, 1
    %p60 = por %p58, %p59
    %p62 = scmp.ne.s32.totalorder %s47, %s61
    %p63 = scmp.eq.s32.totalorder %s16, 0
    %p64 = por %p62, %p63
    %s66 = sadd.s32 %s65, 1
    %p69 = scmp.eq.s32.totalorder %s10, 1
    %p70 = scmp.ne.s32.totalorder %s65, %s67
    %p71 = scmp.eq.s32.totalorder %s10, 0
    %p72 = por %p70, %p71
    %p73 = scmp.ne.s32.totalorder %s65, %s67
    %p74 = scmp.eq.s32.totalorder %s15, 1
    %p75 = por %p73, %p74
    %p76 = scmp.ne.s32.totalorder %s67, %s68
    %p77 = scmp.eq.s32.totalorder %s15, 0
    %p78 = por %p76, %p77
    %p79 = scmp.ne.s32.totalorder %s67, %s68
    %p80 = scmp.eq.s32.totalorder %s16, 1
    %p81 = por %p79, %p80
    %p83 = scmp.ne.s32.totalorder %s68, %s82
    %p84 = scmp.eq.s32.totalorder %s16, 0
    %p85 = por %p83, %p84
    %s87 = sadd.s32 %s86, 1
    %p90 = scmp.eq.s32.totalorder %s10, 1
    %p91 = scmp.ne.s32.totalorder %s86, %s88
    %p92 = scmp.eq.s32.totalorder %s10, 0
    %p93 = por %p91, %p92
    %p94 = scmp.ne.s32.totalorder %s86, %s88
    %p95 = scmp.eq.s32.totalorder %s15, 1
    %p96 = por %p94, %p95
    %p97 = scmp.ne.s32.totalorder %s88, %s89
    %p98 = scmp.eq.s32.totalorder %s15, 0
    %p99 = por %p97, %p98
    %p100 = scmp.ne.s32.totalorder %s88, %s89
    %p101 = scmp.eq.s32.totalorder %s16, 1
    %p102 = por %p100, %p101
    %p104 = scmp.ne.s32.totalorder %s89, %s103
    %p105 = scmp.eq.s32.totalorder %s16, 0
    %p106 = por %p104, %p105
    %p107 = scmp.le.s32.totalorder 1, %s10
    %p108 = scmp.lt.s32.totalorder %s10, 3
    %p109 = pnand %p107, %p108
    %p110 = pneg %p109
    // Predicated region
    $region9: #{lstm_forward.1} parent=5 // pred_check
      _
    $region10: #{lstm_forward.1} parent=5 // pred_check_branch
      %112 = sbr.rel (%p109) target = $region12
    $region11: #{lstm_forward.1} parent=5 // pred_region
      %s113 = ssub.s32 %s10, 1
      // Predicated region
      $region13: #{lstm_forward.1} parent=11 // pred_check
        %p114 = pneg %p57
      $region14: #{lstm_forward.1} parent=11 // pred_check_branch
        %116 = sbr.rel (%p114) target = $region16
      $region15: #{lstm_forward.1} parent=11 // pred_region
        _
      $region16: #{lstm_forward.1} parent=11 // pred_fallthru
        _
    $region12: #{lstm_forward.1} parent=5 // pred_fallthru
      _
    %p117 = scmp.lt.s32.totalorder %s10, 2
    // Predicated region
    $region17: #{lstm_forward.1} parent=5 // pred_check
      %p118 = pneg %p117
    $region18: #{lstm_forward.1} parent=5 // pred_check_branch
      %120 = sbr.rel (%p118) target = $region20
    $region19: #{lstm_forward.1} parent=5 // pred_region
      // Predicated region
      $region21: #{lstm_forward.1} parent=19 // pred_check
        %p121 = pneg %p30
      $region22: #{lstm_forward.1} parent=19 // pred_check_branch
        %123 = sbr.rel (%p121) target = $region24
      $region23: #{lstm_forward.1} parent=19 // pred_region
        %s124 = smul.u32 4, %s10
        %p125 = scmp.lt.s32.totalorder %s124, 7
        %s126 = scalar_select %p125, %s124, 7
        %s127 = smul.addr %s126, 4
        %s128 = smul.addr %s127, 8
        %s129 = scalar_lea.vmem %s0, %s128
        %s130 = smul.u32 4, %s10
      $region24: #{lstm_forward.1} parent=19 // pred_fallthru
        _
    $region20: #{lstm_forward.1} parent=5 // pred_fallthru
      _
    %p131 = scmp.le.s32.totalorder 1, %s10
    %p132 = scmp.lt.s32.totalorder %s10, 3
    %p133 = pnand %p131, %p132
    %p134 = pneg %p133
    // Predicated region
    $region25: #{lstm_forward.1} parent=5 // pred_check
      _
    $region26: #{lstm_forward.1} parent=5 // pred_check_branch
      %136 = sbr.rel (%p133) target = $region28
    $region27: #{lstm_forward.1} parent=5 // pred_region
      %s137 = ssub.s32 %s10, 1
      %s138 = smul.u32 4, %s15
      %p139 = scmp.lt.s32.totalorder %s138, 7
      %s140 = scalar_select %p139, %s138, 7
      %s141 = smul.addr %s140, 4
      %s142 = smul.addr %s141, 8
      %s143 = scalar_lea.vmem %s0, %s142
      %p144 = pneg %p36
      %p145 = pneg %p33
      %p146 = pneg %p57
      %p147 = pneg %p54
      %p148 = pneg %p78
      %p149 = pneg %p75
      %p150 = pneg %p99
      %p151 = pneg %p96
      %s152 = smul.u32 4, %s15
      %p153 = scmp.lt.s32.totalorder %s152, 7
      %s154 = scalar_select %p153, %s152, 7
      %s155 = smul.addr %s154, 4
      %s156 = smul.addr %s155, 8
      %s157 = scalar_lea.vmem %s0, %s156
      %s158 = smul.u32 4, %s15
      %p159 = scmp.eq.s32.totalorder %s15, 0
      // Predicated region
      $region29: #{lstm_forward.1} parent=27 // pred_check
        %p160 = pneg %p159
      $region30: #{lstm_forward.1} parent=27 // pred_check_branch
        %162 = sbr.rel (%p160) target = $region32
      $region31: #{lstm_forward.1} parent=27 // pred_region
        %163 = vst [vmem:[%s2] sm:$0xff] 0.0
        %164 = vst [vmem:[%s3] sm:$0xff] 0.0
      $region32: #{lstm_forward.1} parent=27 // pred_fallthru
        _
      %v165 = vld [vmem:[%s1] sm:$0xff]
      %v166 = vld [vmem:[%s1 + $0x8] sm:$0xff]
      %v167 = vld [vmem:[%s1 + $0x10] sm:$0xff]
      %v168 = vld [vmem:[%s1 + $0x18] sm:$0xff]
      %v169 = vld [vmem:[%s1 + $0x20] sm:$0xff]
      %v170 = vld [vmem:[%s1 + $0x28] sm:$0xff]
      %v171 = vld [vmem:[%s1 + $0x30] sm:$0xff]
      %v172 = vld [vmem:[%s1 + $0x38] sm:$0xff]
      %v173 = vld [vmem:[%s1 + $0x40] sm:$0xff]
      %v174 = vld [vmem:[%s1 + $0x48] sm:$0xff]
      %v175 = vld [vmem:[%s1 + $0x50] sm:$0xff]
      %v176 = vld [vmem:[%s1 + $0x58] sm:$0xff]
      %v177 = vld [vmem:[%s1 + $0x60] sm:$0xff]
      %v178 = vld [vmem:[%s1 + $0x68] sm:$0xff]
      %v179 = vld [vmem:[%s1 + $0x70] sm:$0xff]
      %v180 = vld [vmem:[%s1 + $0x78] sm:$0xff]
      %v181 = vld [vmem:[%s1 + $0x80] sm:$0xff]
      %v182 = vld [vmem:[%s1 + $0x88] sm:$0xff]
      %v183 = vld [vmem:[%s1 + $0x90] sm:$0xff]
      %v184 = vld [vmem:[%s1 + $0x98] sm:$0xff]
      %v185 = vld [vmem:[%s1 + $0xa0] sm:$0xff]
      %v186 = vld [vmem:[%s1 + $0xa8] sm:$0xff]
      %v187 = vld [vmem:[%s1 + $0xb0] sm:$0xff]
      %v188 = vld [vmem:[%s1 + $0xb8] sm:$0xff]
      %v189 = vld [vmem:[%s1 + $0xc0] sm:$0xff]
      %v190 = vld [vmem:[%s1 + $0xc8] sm:$0xff]
      %v191 = vld [vmem:[%s1 + $0xd0] sm:$0xff]
      %v192 = vld [vmem:[%s1 + $0xd8] sm:$0xff]
      %v193 = vld [vmem:[%s1 + $0xe0] sm:$0xff]
      %v194 = vld [vmem:[%s1 + $0xe8] sm:$0xff]
      %v195 = vld [vmem:[%s1 + $0xf0] sm:$0xff]
      %v196 = vld [vmem:[%s1 + $0xf8] sm:$0xff]
      %v197 = vld [vmem:[%s1 + $0x100] sm:$0xff]
      %v198 = vld [vmem:[%s1 + $0x108] sm:$0xff]
      %v199 = vld [vmem:[%s1 + $0x110] sm:$0xff]
      %v200 = vld [vmem:[%s1 + $0x118] sm:$0xff]
      %v201 = vld [vmem:[%s1 + $0x120] sm:$0xff]
      %v202 = vld [vmem:[%s1 + $0x128] sm:$0xff]
      %v203 = vld [vmem:[%s1 + $0x130] sm:$0xff]
      %v204 = vld [vmem:[%s1 + $0x138] sm:$0xff]
      %v205 = vld [vmem:[%s1 + $0x140] sm:$0xff]
      %v206 = vld [vmem:[%s1 + $0x148] sm:$0xff]
      %v207 = vld [vmem:[%s1 + $0x150] sm:$0xff]
      %v208 = vld [vmem:[%s1 + $0x158] sm:$0xff]
      %v209 = vld [vmem:[%s1 + $0x160] sm:$0xff]
      %v210 = vld [vmem:[%s1 + $0x168] sm:$0xff]
      %v211 = vld [vmem:[%s1 + $0x170] sm:$0xff]
      %v212 = vld [vmem:[%s1 + $0x178] sm:$0xff]
      %v213 = vld [vmem:[%s1 + $0x180] sm:$0xff]
      %v214 = vld [vmem:[%s1 + $0x188] sm:$0xff]
      %v215 = vld [vmem:[%s1 + $0x190] sm:$0xff]
      %v216 = vld [vmem:[%s1 + $0x198] sm:$0xff]
      %v217 = vld [vmem:[%s1 + $0x1a0] sm:$0xff]
      %v218 = vld [vmem:[%s1 + $0x1a8] sm:$0xff]
      %v219 = vld [vmem:[%s1 + $0x1b0] sm:$0xff]
      %v220 = vld [vmem:[%s1 + $0x1b8] sm:$0xff]
      %v221 = vld [vmem:[%s1 + $0x1c0] sm:$0xff]
      %v222 = vld [vmem:[%s1 + $0x1c8] sm:$0xff]
      %v223 = vld [vmem:[%s1 + $0x1d0] sm:$0xff]
      %v224 = vld [vmem:[%s1 + $0x1d8] sm:$0xff]
      %v225 = vld [vmem:[%s1 + $0x1e0] sm:$0xff]
      %v226 = vld [vmem:[%s1 + $0x1e8] sm:$0xff]
      %v227 = vld [vmem:[%s1 + $0x1f0] sm:$0xff]
      %v228 = vld [vmem:[%s1 + $0x1f8] sm:$0xff]
      %v229 = vld [vmem:[%s2] sm:$0xff]
      %v230 = vld [vmem:[%s3] sm:$0xff]
      %v231 = vld [vmem:[%s157] sm:$0xff]
      %v232 = vld [vmem:[%s157 + $0x8] sm:$0xff]
      %v233 = vld [vmem:[%s157 + $0x10] sm:$0xff]
      %v234 = vld [vmem:[%s157 + $0x18] sm:$0xff]
      %235 = vmatpush.msra.mxu0 %v225
      %236 = vmatpush.msra.mxu0 %v221
      %237 = vmatpush.msra.mxu0 %v217
      %238 = vmatpush.msra.mxu0 %v213
      %239 = vmatpush.msra.mxu0 %v209
      %240 = vmatpush.msra.mxu0 %v205
      %241 = vmatpush.msra.mxu0 %v201
      %242 = vmatpush.msra.mxu0 %v197
      %243 = vmatpush.msra.mxu0 %v193
      %244 = vmatpush.msra.mxu0 %v189
      %245 = vmatpush.msra.mxu0 %v185
      %246 = vmatpush.msra.mxu0 %v181
      %247 = vmatpush.msra.mxu0 %v177
      %248 = vmatpush.msra.mxu0 %v173
      %249 = vmatpush.msra.mxu0 %v169
      %250 = vmatpush.msra.mxu0 %v165
      %251 = vmatmul.f32.gmra.mxu0 %v229
      %v252 = vpop.f32.mrf.mxu0
      %v253 = vadd.f32 0.0, %v252
      %254 = vdwg.mxu0
      %255 = vmatpush.msra.mxu0 %v226
      %256 = vmatpush.msra.mxu0 %v222
      %257 = vmatpush.msra.mxu0 %v218
      %258 = vmatpush.msra.mxu0 %v214
      %259 = vmatpush.msra.mxu0 %v210
      %260 = vmatpush.msra.mxu0 %v206
      %261 = vmatpush.msra.mxu0 %v202
      %262 = vmatpush.msra.mxu0 %v198
      %263 = vmatpush.msra.mxu0 %v194
      %264 = vmatpush.msra.mxu0 %v190
      %265 = vmatpush.msra.mxu0 %v186
      %266 = vmatpush.msra.mxu0 %v182
      %267 = vmatpush.msra.mxu0 %v178
      %268 = vmatpush.msra.mxu0 %v174
      %269 = vmatpush.msra.mxu0 %v170
      %270 = vmatpush.msra.mxu0 %v166
      %271 = vmatmul.f32.gmra.mxu0 %v229
      %v272 = vpop.f32.mrf.mxu0
      %v273 = vadd.f32 0.0, %v272
      %274 = vdwg.mxu0
      %275 = vmatpush.msra.mxu0 %v227
      %276 = vmatpush.msra.mxu0 %v223
      %277 = vmatpush.msra.mxu0 %v219
      %278 = vmatpush.msra.mxu0 %v215
      %279 = vmatpush.msra.mxu0 %v211
      %280 = vmatpush.msra.mxu0 %v207
      %281 = vmatpush.msra.mxu0 %v203
      %282 = vmatpush.msra.mxu0 %v199
      %283 = vmatpush.msra.mxu0 %v195
      %284 = vmatpush.msra.mxu0 %v191
      %285 = vmatpush.msra.mxu0 %v187
      %286 = vmatpush.msra.mxu0 %v183
      %287 = vmatpush.msra.mxu0 %v179
      %288 = vmatpush.msra.mxu0 %v175
      %289 = vmatpush.msra.mxu0 %v171
      %290 = vmatpush.msra.mxu0 %v167
      %291 = vmatmul.f32.gmra.mxu0 %v229
      %v292 = vpop.f32.mrf.mxu0
      %v293 = vadd.f32 0.0, %v292
      %294 = vdwg.mxu0
      %295 = vmatpush.msra.mxu0 %v228
      %296 = vmatpush.msra.mxu0 %v224
      %297 = vmatpush.msra.mxu0 %v220
      %298 = vmatpush.msra.mxu0 %v216
      %299 = vmatpush.msra.mxu0 %v212
      %300 = vmatpush.msra.mxu0 %v208
      %301 = vmatpush.msra.mxu0 %v204
      %302 = vmatpush.msra.mxu0 %v200
      %303 = vmatpush.msra.mxu0 %v196
      %304 = vmatpush.msra.mxu0 %v192
      %305 = vmatpush.msra.mxu0 %v188
      %306 = vmatpush.msra.mxu0 %v184
      %307 = vmatpush.msra.mxu0 %v180
      %308 = vmatpush.msra.mxu0 %v176
      %309 = vmatpush.msra.mxu0 %v172
      %310 = vmatpush.msra.mxu0 %v168
      %311 = vmatmul.f32.gmra.mxu0 %v229
      %v312 = vpop.f32.mrf.mxu0
      %v313 = vadd.f32 0.0, %v312
      %314 = vdwg.mxu0
      %v315 = vadd.f32 %v231, %v253
      %v316 = vadd.f32 %v232, %v273
      %v317 = vadd.f32 %v233, %v293
      %v318 = vadd.f32 %v234, %v313
      %v319 = vxor.u32 %v315, 2147483648
      %v320 = vxor.u32 %v316, 2147483648
      %v321 = vxor.u32 %v317, 2147483648
      %v322 = vmul.f32 %v319, 1.442695
      %v323 = vpow.pop %v322
      %v324 = vmul.f32 %v320, 1.442695
      %v325 = vpow.pop %v324
      %v326 = vmul.f32 %v321, 1.442695
      %v327 = vpow.pop %v326
      %v328 = vadd.f32 %v323, 1.0
      %v329 = vadd.f32 %v325, 1.0
      %v330 = vadd.f32 %v327, 1.0
      %v331 = vrcp.pop %v328
      %v332 = vmul.f32 %v328, %v331
      %v333 = vsub.f32 1.0, %v332
      %v334 = vmul.f32 %v331, %v333
      %v335 = vadd.f32 %v331, %v334
      %vm336 = vweird.f32 %v328
      %vm337 = vweird.f32 %v331
      %vm338 = vmor %vm336, %vm337
      %v339 = vsel %vm338, %v331, %v335
      %v340 = vand.u32 2147483647, %v328
      %vm341 = vcmp.eq.f32.partialorder %v340, 8.507059e+37
      %v342 = vand.u32 %v328, 2147483648
      %v343 = vor.u32 1.1754944e-38, %v342
      %v344 = vsel %vm341, %v343, %v339
      %v345 = vmul.f32 1.0, %v344
      %v346 = vrcp.pop %v329
      %v347 = vmul.f32 %v329, %v346
      %v348 = vsub.f32 1.0, %v347
      %v349 = vmul.f32 %v346, %v348
      %v350 = vadd.f32 %v346, %v349
      %vm351 = vweird.f32 %v329
      %vm352 = vweird.f32 %v346
      %vm353 = vmor %vm351, %vm352
      %v354 = vsel %vm353, %v346, %v350
      %v355 = vand.u32 2147483647, %v329
      %vm356 = vcmp.eq.f32.partialorder %v355, 8.507059e+37
      %v357 = vand.u32 %v329, 2147483648
      %v358 = vor.u32 1.1754944e-38, %v357
      %v359 = vsel %vm356, %v358, %v354
      %v360 = vmul.f32 1.0, %v359
      %v361 = vrcp.pop %v330
      %v362 = vmul.f32 %v330, %v361
      %v363 = vsub.f32 1.0, %v362
      %v364 = vmul.f32 %v361, %v363
      %v365 = vadd.f32 %v361, %v364
      %vm366 = vweird.f32 %v330
      %vm367 = vweird.f32 %v361
      %vm368 = vmor %vm366, %vm367
      %v369 = vsel %vm368, %v361, %v365
      %v370 = vand.u32 2147483647, %v330
      %vm371 = vcmp.eq.f32.partialorder %v370, 8.507059e+37
      %v372 = vand.u32 %v330, 2147483648
      %v373 = vor.u32 1.1754944e-38, %v372
      %v374 = vsel %vm371, %v373, %v369
      %v375 = vmul.f32 1.0, %v374
      %v376 = vtanh.pop %v318
      %v377 = vmul.f32 %v360, %v230
      %v378 = vmul.f32 %v345, %v376
      %v379 = vadd.f32 %v377, %v378
      %v380 = vtanh.pop %v379
      %v381 = vmul.f32 %v375, %v380
      %s382 = scalar_lea.vmem %s157, 32
      %v383 = vld [vmem:[%s382] sm:$0xff]
      %v384 = vld [vmem:[%s382 + $0x8] sm:$0xff]
      %v385 = vld [vmem:[%s382 + $0x10] sm:$0xff]
      %v386 = vld [vmem:[%s382 + $0x18] sm:$0xff]
      %387 = vmatpush.msra.mxu0 %v225
      %388 = vmatpush.msra.mxu0 %v221
      %389 = vmatpush.msra.mxu0 %v217
      %390 = vmatpush.msra.mxu0 %v213
      %391 = vmatpush.msra.mxu0 %v209
      %392 = vmatpush.msra.mxu0 %v205
      %393 = vmatpush.msra.mxu0 %v201
      %394 = vmatpush.msra.mxu0 %v197
      %395 = vmatpush.msra.mxu0 %v193
      %396 = vmatpush.msra.mxu0 %v189
      %397 = vmatpush.msra.mxu0 %v185
      %398 = vmatpush.msra.mxu0 %v181
      %399 = vmatpush.msra.mxu0 %v177
      %400 = vmatpush.msra.mxu0 %v173
      %401 = vmatpush.msra.mxu0 %v169
      %402 = vmatpush.msra.mxu0 %v165
      %403 = vmatmul.f32.gmra.mxu0 %v381
      %v404 = vpop.f32.mrf.mxu0
      %v405 = vadd.f32 0.0, %v404
      %406 = vdwg.mxu0
      %407 = vmatpush.msra.mxu0 %v226
      %408 = vmatpush.msra.mxu0 %v222
      %409 = vmatpush.msra.mxu0 %v218
      %410 = vmatpush.msra.mxu0 %v214
      %411 = vmatpush.msra.mxu0 %v210
      %412 = vmatpush.msra.mxu0 %v206
      %413 = vmatpush.msra.mxu0 %v202
      %414 = vmatpush.msra.mxu0 %v198
      %415 = vmatpush.msra.mxu0 %v194
      %416 = vmatpush.msra.mxu0 %v190
      %417 = vmatpush.msra.mxu0 %v186
      %418 = vmatpush.msra.mxu0 %v182
      %419 = vmatpush.msra.mxu0 %v178
      %420 = vmatpush.msra.mxu0 %v174
      %421 = vmatpush.msra.mxu0 %v170
      %422 = vmatpush.msra.mxu0 %v166
      %423 = vmatmul.f32.gmra.mxu0 %v381
      %v424 = vpop.f32.mrf.mxu0
      %v425 = vadd.f32 0.0, %v424
      %426 = vdwg.mxu0
      %427 = vmatpush.msra.mxu0 %v227
      %428 = vmatpush.msra.mxu0 %v223
      %429 = vmatpush.msra.mxu0 %v219
      %430 = vmatpush.msra.mxu0 %v215
      %431 = vmatpush.msra.mxu0 %v211
      %432 = vmatpush.msra.mxu0 %v207
      %433 = vmatpush.msra.mxu0 %v203
      %434 = vmatpush.msra.mxu0 %v199
      %435 = vmatpush.msra.mxu0 %v195
      %436 = vmatpush.msra.mxu0 %v191
      %437 = vmatpush.msra.mxu0 %v187
      %438 = vmatpush.msra.mxu0 %v183
      %439 = vmatpush.msra.mxu0 %v179
      %440 = vmatpush.msra.mxu0 %v175
      %441 = vmatpush.msra.mxu0 %v171
      %442 = vmatpush.msra.mxu0 %v167
      %443 = vmatmul.f32.gmra.mxu0 %v381
      %v444 = vpop.f32.mrf.mxu0
      %v445 = vadd.f32 0.0, %v444
      %446 = vdwg.mxu0
      %447 = vmatpush.msra.mxu0 %v228
      %448 = vmatpush.msra.mxu0 %v224
      %449 = vmatpush.msra.mxu0 %v220
      %450 = vmatpush.msra.mxu0 %v216
      %451 = vmatpush.msra.mxu0 %v212
      %452 = vmatpush.msra.mxu0 %v208
      %453 = vmatpush.msra.mxu0 %v204
      %454 = vmatpush.msra.mxu0 %v200
      %455 = vmatpush.msra.mxu0 %v196
      %456 = vmatpush.msra.mxu0 %v192
      %457 = vmatpush.msra.mxu0 %v188
      %458 = vmatpush.msra.mxu0 %v184
      %459 = vmatpush.msra.mxu0 %v180
      %460 = vmatpush.msra.mxu0 %v176
      %461 = vmatpush.msra.mxu0 %v172
      %462 = vmatpush.msra.mxu0 %v168
      %463 = vmatmul.f32.gmra.mxu0 %v381
      %v464 = vpop.f32.mrf.mxu0
      %v465 = vadd.f32 0.0, %v464
      %466 = vdwg.mxu0
      %v467 = vadd.f32 %v383, %v405
      %v468 = vadd.f32 %v384, %v425
      %v469 = vadd.f32 %v385, %v445
      %v470 = vadd.f32 %v386, %v465
      %v471 = vxor.u32 %v467, 2147483648
      %v472 = vxor.u32 %v468, 2147483648
      %v473 = vxor.u32 %v469, 2147483648
      %v474 = vmul.f32 %v471, 1.442695
      %v475 = vpow.pop %v474
      %v476 = vmul.f32 %v472, 1.442695
      %v477 = vpow.pop %v476
      %v478 = vmul.f32 %v473, 1.442695
      %v479 = vpow.pop %v478
      %v480 = vadd.f32 %v475, 1.0
      %v481 = vadd.f32 %v477, 1.0
      %v482 = vadd.f32 %v479, 1.0
      %v483 = vrcp.pop %v480
      %v484 = vmul.f32 %v480, %v483
      %v485 = vsub.f32 1.0, %v484
      %v486 = vmul.f32 %v483, %v485
      %v487 = vadd.f32 %v483, %v486
      %vm488 = vweird.f32 %v480
      %vm489 = vweird.f32 %v483
      %vm490 = vmor %vm488, %vm489
      %v491 = vsel %vm490, %v483, %v487
      %v492 = vand.u32 2147483647, %v480
      %vm493 = vcmp.eq.f32.partialorder %v492, 8.507059e+37
      %v494 = vand.u32 %v480, 2147483648
      %v495 = vor.u32 1.1754944e-38, %v494
      %v496 = vsel %vm493, %v495, %v491
      %v497 = vmul.f32 1.0, %v496
      %v498 = vrcp.pop %v481
      %v499 = vmul.f32 %v481, %v498
      %v500 = vsub.f32 1.0, %v499
      %v501 = vmul.f32 %v498, %v500
      %v502 = vadd.f32 %v498, %v501
      %vm503 = vweird.f32 %v481
      %vm504 = vweird.f32 %v498
      %vm505 = vmor %vm503, %vm504
      %v506 = vsel %vm505, %v498, %v502
      %v507 = vand.u32 2147483647, %v481
      %vm508 = vcmp.eq.f32.partialorder %v507, 8.507059e+37
      %v509 = vand.u32 %v481, 2147483648
      %v510 = vor.u32 1.1754944e-38, %v509
      %v511 = vsel %vm508, %v510, %v506
      %v512 = vmul.f32 1.0, %v511
      %v513 = vrcp.pop %v482
      %v514 = vmul.f32 %v482, %v513
      %v515 = vsub.f32 1.0, %v514
      %v516 = vmul.f32 %v513, %v515
      %v517 = vadd.f32 %v513, %v516
      %vm518 = vweird.f32 %v482
      %vm519 = vweird.f32 %v513
      %vm520 = vmor %vm518, %vm519
      %v521 = vsel %vm520, %v513, %v517
      %v522 = vand.u32 2147483647, %v482
      %vm523 = vcmp.eq.f32.partialorder %v522, 8.507059e+37
      %v524 = vand.u32 %v482, 2147483648
      %v525 = vor.u32 1.1754944e-38, %v524
      %v526 = vsel %vm523, %v525, %v521
      %v527 = vmul.f32 1.0, %v526
      %v528 = vtanh.pop %v470
      %v529 = vmul.f32 %v512, %v379
      %v530 = vmul.f32 %v497, %v528
      %v531 = vadd.f32 %v529, %v530
      %v532 = vtanh.pop %v531
      %v533 = vmul.f32 %v527, %v532
      %s534 = scalar_lea.vmem %s157, 64
      %v535 = vld [vmem:[%s534] sm:$0xff]
      %v536 = vld [vmem:[%s534 + $0x8] sm:$0xff]
      %v537 = vld [vmem:[%s534 + $0x10] sm:$0xff]
      %v538 = vld [vmem:[%s534 + $0x18] sm:$0xff]
      %539 = vmatpush.msra.mxu0 %v225
      %540 = vmatpush.msra.mxu0 %v221
      %541 = vmatpush.msra.mxu0 %v217
      %542 = vmatpush.msra.mxu0 %v213
      %543 = vmatpush.msra.mxu0 %v209
      %544 = vmatpush.msra.mxu0 %v205
      %545 = vmatpush.msra.mxu0 %v201
      %546 = vmatpush.msra.mxu0 %v197
      %547 = vmatpush.msra.mxu0 %v193
      %548 = vmatpush.msra.mxu0 %v189
      %549 = vmatpush.msra.mxu0 %v185
      %550 = vmatpush.msra.mxu0 %v181
      %551 = vmatpush.msra.mxu0 %v177
      %552 = vmatpush.msra.mxu0 %v173
      %553 = vmatpush.msra.mxu0 %v169
      %554 = vmatpush.msra.mxu0 %v165
      %555 = vmatmul.f32.gmra.mxu0 %v533
      %v556 = vpop.f32.mrf.mxu0
      %v557 = vadd.f32 0.0, %v556
      %558 = vdwg.mxu0
      %559 = vmatpush.msra.mxu0 %v226
      %560 = vmatpush.msra.mxu0 %v222
      %561 = vmatpush.msra.mxu0 %v218
      %562 = vmatpush.msra.mxu0 %v214
      %563 = vmatpush.msra.mxu0 %v210
      %564 = vmatpush.msra.mxu0 %v206
      %565 = vmatpush.msra.mxu0 %v202
      %566 = vmatpush.msra.mxu0 %v198
      %567 = vmatpush.msra.mxu0 %v194
      %568 = vmatpush.msra.mxu0 %v190
      %569 = vmatpush.msra.mxu0 %v186
      %570 = vmatpush.msra.mxu0 %v182
      %571 = vmatpush.msra.mxu0 %v178
      %572 = vmatpush.msra.mxu0 %v174
      %573 = vmatpush.msra.mxu0 %v170
      %574 = vmatpush.msra.mxu0 %v166
      %575 = vmatmul.f32.gmra.mxu0 %v533
      %v576 = vpop.f32.mrf.mxu0
      %v577 = vadd.f32 0.0, %v576
      %578 = vdwg.mxu0
      %579 = vmatpush.msra.mxu0 %v227
      %580 = vmatpush.msra.mxu0 %v223
      %581 = vmatpush.msra.mxu0 %v219
      %582 = vmatpush.msra.mxu0 %v215
      %583 = vmatpush.msra.mxu0 %v211
      %584 = vmatpush.msra.mxu0 %v207
      %585 = vmatpush.msra.mxu0 %v203
      %586 = vmatpush.msra.mxu0 %v199
      %587 = vmatpush.msra.mxu0 %v195
      %588 = vmatpush.msra.mxu0 %v191
      %589 = vmatpush.msra.mxu0 %v187
      %590 = vmatpush.msra.mxu0 %v183
      %591 = vmatpush.msra.mxu0 %v179
      %592 = vmatpush.msra.mxu0 %v175
      %593 = vmatpush.msra.mxu0 %v171
      %594 = vmatpush.msra.mxu0 %v167
      %595 = vmatmul.f32.gmra.mxu0 %v533
      %v596 = vpop.f32.mrf.mxu0
      %v597 = vadd.f32 0.0, %v596
      %598 = vdwg.mxu0
      %599 = vmatpush.msra.mxu0 %v228
      %600 = vmatpush.msra.mxu0 %v224
      %601 = vmatpush.msra.mxu0 %v220
      %602 = vmatpush.msra.mxu0 %v216
      %603 = vmatpush.msra.mxu0 %v212
      %604 = vmatpush.msra.mxu0 %v208
      %605 = vmatpush.msra.mxu0 %v204
      %606 = vmatpush.msra.mxu0 %v200
      %607 = vmatpush.msra.mxu0 %v196
      %608 = vmatpush.msra.mxu0 %v192
      %609 = vmatpush.msra.mxu0 %v188
      %610 = vmatpush.msra.mxu0 %v184
      %611 = vmatpush.msra.mxu0 %v180
      %612 = vmatpush.msra.mxu0 %v176
      %613 = vmatpush.msra.mxu0 %v172
      %614 = vmatpush.msra.mxu0 %v168
      %615 = vmatmul.f32.gmra.mxu0 %v533
      %v616 = vpop.f32.mrf.mxu0
      %v617 = vadd.f32 0.0, %v616
      %618 = vdwg.mxu0
      %v619 = vadd.f32 %v535, %v557
      %v620 = vadd.f32 %v536, %v577
      %v621 = vadd.f32 %v537, %v597
      %v622 = vadd.f32 %v538, %v617
      %v623 = vxor.u32 %v619, 2147483648
      %v624 = vxor.u32 %v620, 2147483648
      %v625 = vxor.u32 %v621, 2147483648
      %v626 = vmul.f32 %v623, 1.442695
      %v627 = vpow.pop %v626
      %v628 = vmul.f32 %v624, 1.442695
      %v629 = vpow.pop %v628
      %v630 = vmul.f32 %v625, 1.442695
      %v631 = vpow.pop %v630
      %v632 = vadd.f32 %v627, 1.0
      %v633 = vadd.f32 %v629, 1.0
      %v634 = vadd.f32 %v631, 1.0
      %v635 = vrcp.pop %v632
      %v636 = vmul.f32 %v632, %v635
      %v637 = vsub.f32 1.0, %v636
      %v638 = vmul.f32 %v635, %v637
      %v639 = vadd.f32 %v635, %v638
      %vm640 = vweird.f32 %v632
      %vm641 = vweird.f32 %v635
      %vm642 = vmor %vm640, %vm641
      %v643 = vsel %vm642, %v635, %v639
      %v644 = vand.u32 2147483647, %v632
      %vm645 = vcmp.eq.f32.partialorder %v644, 8.507059e+37
      %v646 = vand.u32 %v632, 2147483648
      %v647 = vor.u32 1.1754944e-38, %v646
      %v648 = vsel %vm645, %v647, %v643
      %v649 = vmul.f32 1.0, %v648
      %v650 = vrcp.pop %v633
      %v651 = vmul.f32 %v633, %v650
      %v652 = vsub.f32 1.0, %v651
      %v653 = vmul.f32 %v650, %v652
      %v654 = vadd.f32 %v650, %v653
      %vm655 = vweird.f32 %v633
      %vm656 = vweird.f32 %v650
      %vm657 = vmor %vm655, %vm656
      %v658 = vsel %vm657, %v650, %v654
      %v659 = vand.u32 2147483647, %v633
      %vm660 = vcmp.eq.f32.partialorder %v659, 8.507059e+37
      %v661 = vand.u32 %v633, 2147483648
      %v662 = vor.u32 1.1754944e-38, %v661
      %v663 = vsel %vm660, %v662, %v658
      %v664 = vmul.f32 1.0, %v663
      %v665 = vrcp.pop %v634
      %v666 = vmul.f32 %v634, %v665
      %v667 = vsub.f32 1.0, %v666
      %v668 = vmul.f32 %v665, %v667
      %v669 = vadd.f32 %v665, %v668
      %vm670 = vweird.f32 %v634
      %vm671 = vweird.f32 %v665
      %vm672 = vmor %vm670, %vm671
      %v673 = vsel %vm672, %v665, %v669
      %v674 = vand.u32 2147483647, %v634
      %vm675 = vcmp.eq.f32.partialorder %v674, 8.507059e+37
      %v676 = vand.u32 %v634, 2147483648
      %v677 = vor.u32 1.1754944e-38, %v676
      %v678 = vsel %vm675, %v677, %v673
      %v679 = vmul.f32 1.0, %v678
      %v680 = vtanh.pop %v622
      %v681 = vmul.f32 %v664, %v531
      %v682 = vmul.f32 %v649, %v680
      %v683 = vadd.f32 %v681, %v682
      %v684 = vtanh.pop %v683
      %v685 = vmul.f32 %v679, %v684
      %s686 = scalar_lea.vmem %s157, 96
      %v687 = vld [vmem:[%s686] sm:$0xff]
      %v688 = vld [vmem:[%s686 + $0x8] sm:$0xff]
      %v689 = vld [vmem:[%s686 + $0x10] sm:$0xff]
      %v690 = vld [vmem:[%s686 + $0x18] sm:$0xff]
      %691 = vmatpush.msra.mxu0 %v225
      %692 = vmatpush.msra.mxu0 %v221
      %693 = vmatpush.msra.mxu0 %v217
      %694 = vmatpush.msra.mxu0 %v213
      %695 = vmatpush.msra.mxu0 %v209
      %696 = vmatpush.msra.mxu0 %v205
      %697 = vmatpush.msra.mxu0 %v201
      %698 = vmatpush.msra.mxu0 %v197
      %699 = vmatpush.msra.mxu0 %v193
      %700 = vmatpush.msra.mxu0 %v189
      %701 = vmatpush.msra.mxu0 %v185
      %702 = vmatpush.msra.mxu0 %v181
      %703 = vmatpush.msra.mxu0 %v177
      %704 = vmatpush.msra.mxu0 %v173
      %705 = vmatpush.msra.mxu0 %v169
      %706 = vmatpush.msra.mxu0 %v165
      %707 = vmatmul.f32.gmra.mxu0 %v685
      %v708 = vpop.f32.mrf.mxu0
      %v709 = vadd.f32 0.0, %v708
      %710 = vdwg.mxu0
      %711 = vmatpush.msra.mxu0 %v226
      %712 = vmatpush.msra.mxu0 %v222
      %713 = vmatpush.msra.mxu0 %v218
      %714 = vmatpush.msra.mxu0 %v214
      %715 = vmatpush.msra.mxu0 %v210
      %716 = vmatpush.msra.mxu0 %v206
      %717 = vmatpush.msra.mxu0 %v202
      %718 = vmatpush.msra.mxu0 %v198
      %719 = vmatpush.msra.mxu0 %v194
      %720 = vmatpush.msra.mxu0 %v190
      %721 = vmatpush.msra.mxu0 %v186
      %722 = vmatpush.msra.mxu0 %v182
      %723 = vmatpush.msra.mxu0 %v178
      %724 = vmatpush.msra.mxu0 %v174
      %725 = vmatpush.msra.mxu0 %v170
      %726 = vmatpush.msra.mxu0 %v166
      %727 = vmatmul.f32.gmra.mxu0 %v685
      %v728 = vpop.f32.mrf.mxu0
      %v729 = vadd.f32 0.0, %v728
      %730 = vdwg.mxu0
      %731 = vmatpush.msra.mxu0 %v227
      %732 = vmatpush.msra.mxu0 %v223
      %733 = vmatpush.msra.mxu0 %v219
      %734 = vmatpush.msra.mxu0 %v215
      %735 = vmatpush.msra.mxu0 %v211
      %736 = vmatpush.msra.mxu0 %v207
      %737 = vmatpush.msra.mxu0 %v203
      %738 = vmatpush.msra.mxu0 %v199
      %739 = vmatpush.msra.mxu0 %v195
      %740 = vmatpush.msra.mxu0 %v191
      %741 = vmatpush.msra.mxu0 %v187
      %742 = vmatpush.msra.mxu0 %v183
      %743 = vmatpush.msra.mxu0 %v179
      %744 = vmatpush.msra.mxu0 %v175
      %745 = vmatpush.msra.mxu0 %v171
      %746 = vmatpush.msra.mxu0 %v167
      %747 = vmatmul.f32.gmra.mxu0 %v685
      %v748 = vpop.f32.mrf.mxu0
      %v749 = vadd.f32 0.0, %v748
      %750 = vdwg.mxu0
      %751 = vmatpush.msra.mxu0 %v228
      %752 = vmatpush.msra.mxu0 %v224
      %753 = vmatpush.msra.mxu0 %v220
      %754 = vmatpush.msra.mxu0 %v216
      %755 = vmatpush.msra.mxu0 %v212
      %756 = vmatpush.msra.mxu0 %v208
      %757 = vmatpush.msra.mxu0 %v204
      %758 = vmatpush.msra.mxu0 %v200
      %759 = vmatpush.msra.mxu0 %v196
      %760 = vmatpush.msra.mxu0 %v192
      %761 = vmatpush.msra.mxu0 %v188
      %762 = vmatpush.msra.mxu0 %v184
      %763 = vmatpush.msra.mxu0 %v180
      %764 = vmatpush.msra.mxu0 %v176
      %765 = vmatpush.msra.mxu0 %v172
      %766 = vmatpush.msra.mxu0 %v168
      %767 = vmatmul.f32.gmra.mxu0 %v685
      %v768 = vpop.f32.mrf.mxu0
      %v769 = vadd.f32 0.0, %v768
      %770 = vdwg.mxu0
      %v771 = vadd.f32 %v687, %v709
      %v772 = vadd.f32 %v688, %v729
      %v773 = vadd.f32 %v689, %v749
      %v774 = vadd.f32 %v690, %v769
      %v775 = vxor.u32 %v771, 2147483648
      %v776 = vxor.u32 %v772, 2147483648
      %v777 = vxor.u32 %v773, 2147483648
      %v778 = vmul.f32 %v775, 1.442695
      %v779 = vpow.pop %v778
      %v780 = vmul.f32 %v776, 1.442695
      %v781 = vpow.pop %v780
      %v782 = vmul.f32 %v777, 1.442695
      %v783 = vpow.pop %v782
      %v784 = vadd.f32 %v779, 1.0
      %v785 = vadd.f32 %v781, 1.0
      %v786 = vadd.f32 %v783, 1.0
      %v787 = vrcp.pop %v784
      %v788 = vmul.f32 %v784, %v787
      %v789 = vsub.f32 1.0, %v788
      %v790 = vmul.f32 %v787, %v789
      %v791 = vadd.f32 %v787, %v790
      %vm792 = vweird.f32 %v784
      %vm793 = vweird.f32 %v787
      %vm794 = vmor %vm792, %vm793
      %v795 = vsel %vm794, %v787, %v791
      %v796 = vand.u32 2147483647, %v784
      %vm797 = vcmp.eq.f32.partialorder %v796, 8.507059e+37
      %v798 = vand.u32 %v784, 2147483648
      %v799 = vor.u32 1.1754944e-38, %v798
      %v800 = vsel %vm797, %v799, %v795
      %v801 = vmul.f32 1.0, %v800
      %v802 = vrcp.pop %v785
      %v803 = vmul.f32 %v785, %v802
      %v804 = vsub.f32 1.0, %v803
      %v805 = vmul.f32 %v802, %v804
      %v806 = vadd.f32 %v802, %v805
      %vm807 = vweird.f32 %v785
      %vm808 = vweird.f32 %v802
      %vm809 = vmor %vm807, %vm808
      %v810 = vsel %vm809, %v802, %v806
      %v811 = vand.u32 2147483647, %v785
      %vm812 = vcmp.eq.f32.partialorder %v811, 8.507059e+37
      %v813 = vand.u32 %v785, 2147483648
      %v814 = vor.u32 1.1754944e-38, %v813
      %v815 = vsel %vm812, %v814, %v810
      %v816 = vmul.f32 1.0, %v815
      %v817 = vrcp.pop %v786
      %v818 = vmul.f32 %v786, %v817
      %v819 = vsub.f32 1.0, %v818
      %v820 = vmul.f32 %v817, %v819
      %v821 = vadd.f32 %v817, %v820
      %vm822 = vweird.f32 %v786
      %vm823 = vweird.f32 %v817
      %vm824 = vmor %vm822, %vm823
      %v825 = vsel %vm824, %v817, %v821
      %v826 = vand.u32 2147483647, %v786
      %vm827 = vcmp.eq.f32.partialorder %v826, 8.507059e+37
      %v828 = vand.u32 %v786, 2147483648
      %v829 = vor.u32 1.1754944e-38, %v828
      %v830 = vsel %vm827, %v829, %v825
      %v831 = vmul.f32 1.0, %v830
      %v832 = vtanh.pop %v774
      %v833 = vmul.f32 %v816, %v683
      %v834 = vmul.f32 %v801, %v832
      %v835 = vadd.f32 %v833, %v834
      %v836 = vtanh.pop %v835
      %v837 = vmul.f32 %v831, %v836
      %838 = vst [vmem:[%s2] sm:$0xff] %v837
      %839 = vst [vmem:[%s3] sm:$0xff] %v835
      // Predicated region
      $region33: #{lstm_forward.1} parent=27 // pred_check
        %p840 = pneg %p75
      $region34: #{lstm_forward.1} parent=27 // pred_check_branch
        %842 = sbr.rel (%p840) target = $region36
      $region35: #{lstm_forward.1} parent=27 // pred_region
        _
      $region36: #{lstm_forward.1} parent=27 // pred_fallthru
        _
      // Predicated region
      $region37: #{lstm_forward.1} parent=27 // pred_check
        %p843 = pneg %p96
      $region38: #{lstm_forward.1} parent=27 // pred_check_branch
        %845 = sbr.rel (%p843) target = $region40
      $region39: #{lstm_forward.1} parent=27 // pred_region
        _
      $region40: #{lstm_forward.1} parent=27 // pred_fallthru
        _
      // Predicated region
      $region41: #{lstm_forward.1} parent=27 // pred_check
        %p846 = pneg %p75
      $region42: #{lstm_forward.1} parent=27 // pred_check_branch
        %848 = sbr.rel (%p846) target = $region44
      $region43: #{lstm_forward.1} parent=27 // pred_region
        _
      $region44: #{lstm_forward.1} parent=27 // pred_fallthru
        _
      // Predicated region
      $region45: #{lstm_forward.1} parent=27 // pred_check
        %p849 = pneg %p96
      $region46: #{lstm_forward.1} parent=27 // pred_check_branch
        %851 = sbr.rel (%p849) target = $region48
      $region47: #{lstm_forward.1} parent=27 // pred_region
        _
      $region48: #{lstm_forward.1} parent=27 // pred_fallthru
        _
    $region28: #{lstm_forward.1} parent=5 // pred_fallthru
      _
    %p852 = scmp.le.s32.totalorder 2, %s10
    // Predicated region
    $region49: #{lstm_forward.1} parent=5 // pred_check
      %p853 = pneg %p852
    $region50: #{lstm_forward.1} parent=5 // pred_check_branch
      %855 = sbr.rel (%p853) target = $region52
    $region51: #{lstm_forward.1} parent=5 // pred_region
      %s856 = ssub.s32 %s10, 2
    $region52: #{lstm_forward.1} parent=5 // pred_fallthru
      _
  $region6: #{lstm_forward.1} parent=0 // loop_footer
    %s14 = sadd.s32 1, %s10
  $region7: #{lstm_forward.1} parent=0 // loop_footer_branch
    %9 = sbr.rel target = $region3
  $region8: #{lstm_forward.1} parent=0 // loop_exit
    _

</llo_original>
